<compile_context>
chip_gen: v5e
topology: v5e:2x2
jax: 0.10.0
libtpu: 0.0.40
codegen_flags: <defaults>
</compile_context>

<pallas_src>
import numpy as np
import jax
import jax.numpy as jnp
from jax import lax
from jax.experimental import pallas as pl
from jax.experimental.pallas import tpu as pltpu

EPS = 1e-5
C1, C2, C3 = 64, 128, 256


def _round_up(x, m):
    return (x + m - 1) // m * m


def _gn_relu(h, gamma, beta):
    """Fused GroupNorm(num_groups=1) + affine + ReLU over the last axis.

    One traversal of h: var = E[h^2] - mu^2 (biased, like torch), clamped >= 0,
    then y = relu(h * s + (beta - mu * s)) with s = gamma * rsqrt(var + eps).
    """
    mu = jnp.mean(h, axis=-1, keepdims=True)
    var = jnp.maximum(jnp.mean(h * h, axis=-1, keepdims=True) - mu * mu, 0.0)
    scale = gamma * lax.rsqrt(var + EPS)              # (TB,1)*(1,C) -> (TB,C)
    return jnp.maximum(h * scale + (beta - mu * scale), 0.0)


def force_encoder_kernel(
    x_ref,
    w1_ref, b1_ref, g1_ref, be1_ref,
    w2_ref, b2_ref, g2_ref, be2_ref,
    w3_ref, b3_ref, g3_ref, be3_ref,
    o_ref,
):
    x = x_ref[...]                                    # (TB, 1) f32

    # ---- Layer 1: Linear(1 -> 64) is a rank-1 update -> broadcast FMA on the
    # VPU (no MXU push/pop for a K=1 contraction).
    w1 = w1_ref[...]                                  # (1, 64)
    b1 = b1_ref[...]                                  # (1, 64)
    h1 = x * w1 + b1                                  # (TB, 64)

    # GroupNorm(1,64) stats in closed form: h1[r,:] = x_r*w1 + b1 is affine in
    # the scalar x_r, so   mu_r     = x_r*E[w] + E[b]
    #                      E[h^2]_r = x_r^2*E[w^2] + 2*x_r*E[w*b] + E[b^2]
    # The 5 moments are per-grid-step (1,64) reductions on VMEM-resident rows,
    # replacing two per-row (TB,64) XLU reductions.
    mw = jnp.mean(w1, axis=-1, keepdims=True)         # (1, 1)
    mb = jnp.mean(b1, axis=-1, keepdims=True)
    ew2 = jnp.mean(w1 * w1, axis=-1, keepdims=True)
    ewb = jnp.mean(w1 * b1, axis=-1, keepdims=True)
    eb2 = jnp.mean(b1 * b1, axis=-1, keepdims=True)

    mu1 = x * mw + mb                                 # (TB, 1)
    e2 = (x * x) * ew2 + (2.0 * x) * ewb + eb2        # (TB, 1)
    var1 = jnp.maximum(e2 - mu1 * mu1, 0.0)
    s1 = g1_ref[...] * lax.rsqrt(var1 + EPS)          # (TB,1)*(1,64) -> (TB,64)
    h1 = jnp.maximum(h1 * s1 + (be1_ref[...] - mu1 * s1), 0.0)

    # ---- Layer 2: Linear(64 -> 128) + GroupNorm(1,128) + ReLU.
    # MXU operands in w2_ref.dtype (bf16 by default), f32 accumulation.
    h2 = jnp.dot(h1.astype(w2_ref.dtype), w2_ref[...],
                 preferred_element_type=jnp.float32) + b2_ref[...]
    h2 = _gn_relu(h2, g2_ref[...], be2_ref[...])

    # ---- Layer 3: Linear(128 -> 256) + GroupNorm(1,256) + ReLU.
    h3 = jnp.dot(h2.astype(w3_ref.dtype), w3_ref[...],
                 preferred_element_type=jnp.float32) + b3_ref[...]
    h3 = _gn_relu(h3, g3_ref[...], be3_ref[...])

    o_ref[...] = h3.astype(o_ref.dtype)


def force_encoder(force, params, *, block_b=2048, mxu_dtype=jnp.bfloat16,
                  out_dtype=jnp.float32):
    """force: (B, 1) f32 -> (B, 256) out_dtype.

    Batch tiling: TB ~= round_up(B / num_tiles, 8) with num_tiles >= 2 so that
    (a) there are >= 2 grid steps to shard over v7x's two TensorCores whenever
    there is enough work, and (b) padding waste stays below one tile instead of
    rounding B up to a fixed TB.  Weights / biases / affine params use constant
    index_maps so they are DMA'd once and stay VMEM-resident across the grid.
    """
    B = force.shape[0]
    force = force.astype(jnp.float32)

    num_tiles = max(2, pl.cdiv(B, block_b))
    TB = min(_round_up(pl.cdiv(B, num_tiles), 8), _round_up(block_b, 8))
    TB = max(TB, 8)
    B_pad = _round_up(B, TB)
    if B_pad != B:
        force = jnp.pad(force, ((0, B_pad - B), (0, 0)))
    grid = (B_pad // TB,)

    param_args = (
        params["w1"], params["b1"], params["g1"], params["be1"],
        params["w2"].astype(mxu_dtype), params["b2"], params["g2"], params["be2"],
        params["w3"].astype(mxu_dtype), params["b3"], params["g3"], params["be3"],
    )
    # Full-shape blocks with a constant index_map -> fetched once, VMEM-resident.
    param_specs = [pl.BlockSpec(p.shape, lambda i: (0, 0)) for p in param_args]

    x_spec = pl.BlockSpec((TB, 1), lambda i: (i, 0))
    o_spec = pl.BlockSpec((TB, C3), lambda i: (i, 0))

    # Explicit scoped-VMEM budget sized from the actual buffers (the default
    # scoped limit on v5e is only 16 MiB, which a 2048-row tile would exceed).
    out_isz = int(np.dtype(out_dtype).itemsize)
    mxu_isz = int(np.dtype(mxu_dtype).itemsize)
    vmem_bytes = (
        2 * TB * 128 * 4                 # input double-buffer ((TB,1) pads to 128 lanes)
        + 2 * TB * C3 * out_isz          # output double-buffer
        + TB * (C1 + C2 + C3) * 4        # f32 intermediates h1/h2/h3
        + TB * (C1 + C2) * mxu_isz       # casts of h1/h2 fed to the MXU
        + (2 << 20)                      # params + compiler scratch headroom
    )
    vmem_limit = int(min(max(vmem_bytes * 3 // 2, 8 << 20), 50 << 20))

    cost = pl.CostEstimate(
        flops=int(B_pad * (2 * C1                      # layer-1 broadcast FMA
                           + 2 * (C1 * C2 + C2 * C3)   # MXU matmuls
                           + 8 * (C1 + C2 + C3))),     # GN + affine + ReLU
        transcendentals=3 * int(B_pad),                # one rsqrt per row per layer
        bytes_accessed=int(
            B_pad * 4 + B_pad * C3 * out_isz           # padded rows are really written
            + sum(int(p.size) * int(np.dtype(p.dtype).itemsize) for p in param_args)),
    )

    out = pl.pallas_call(
        force_encoder_kernel,
        out_shape=jax.ShapeDtypeStruct((B_pad, C3), out_dtype),
        grid=grid,
        in_specs=[x_spec] + param_specs,
        out_specs=o_spec,
        compiler_params=pltpu.CompilerParams(
            dimension_semantics=("parallel",),   # v7x shards batch tiles over its 2 TCs
            vmem_limit_bytes=vmem_limit,
        ),
        cost_estimate=cost,
    )(force, *param_args)
    return out[:B]


def init_params(key):
    """Deterministic synthetic parameters matching the PyTorch module shapes."""
    ks = jax.random.split(key, 6)

    def lin(kw, kb, fan_in, fan_out):
        scale = 1.0 / jnp.sqrt(jnp.float32(fan_in))
        w = jax.random.uniform(kw, (fan_in, fan_out), jnp.float32, -scale, scale)
        b = jax.random.uniform(kb, (1, fan_out), jnp.float32, -scale, scale)
        return w, b

    w1, b1 = lin(ks[0], ks[1], 1, C1)
    w2, b2 = lin(ks[2], ks[3], C1, C2)
    w3, b3 = lin(ks[4], ks[5], C2, C3)
    # GroupNorm affine params default to gamma=1, beta=0 (kept as (1, C) rows).
    return dict(
        w1=w1, b1=b1, g1=jnp.ones((1, C1), jnp.float32), be1=jnp.zeros((1, C1), jnp.float32),
        w2=w2, b2=b2, g2=jnp.ones((1, C2), jnp.float32), be2=jnp.zeros((1, C2), jnp.float32),
        w3=w3, b3=b3, g3=jnp.ones((1, C3), jnp.float32), be3=jnp.zeros((1, C3), jnp.float32),
    )


def force_encoder_ref(force, p):
    """Pure-JAX reference of the PyTorch forward for correctness checking."""
    def layer(x, w, b, g, be):
        h = x @ w + b
        mu = jnp.mean(h, axis=-1, keepdims=True)
        var = jnp.mean((h - mu) ** 2, axis=-1, keepdims=True)
        hn = (h - mu) / jnp.sqrt(var + EPS)
        return jax.nn.relu(hn * g + be)

    x = layer(force, p["w1"], p["b1"], p["g1"], p["be1"])
    x = layer(x, p["w2"], p["b2"], p["g2"], p["be2"])
    x = layer(x, p["w3"], p["b3"], p["g3"], p["be3"])
    return x


if __name__ == "__main__":
    key = jax.random.PRNGKey(0)
    k_in, k_par, k_in2 = jax.random.split(key, 3)

    params = init_params(k_par)

    # (a) Small batch, f32 MXU operands: structural correctness at tight tolerance.
    B = 8
    force = jax.random.normal(k_in, (B, 1), jnp.float32)
    ref = force_encoder_ref(force, params)

    out_f32 = jax.block_until_ready(
        force_encoder(force, params, mxu_dtype=jnp.float32))
    assert out_f32.shape == (B, 256)
    assert jnp.allclose(out_f32, ref, atol=2e-4, rtol=2e-4), "f32-path mismatch vs reference"

    # (b) Default perf path (bf16 MXU operands, f32 accumulation): looser tolerance;
    # GroupNorm after each matmul absorbs most of the bf16 relative error.
    out_bf16 = jax.block_until_ready(force_encoder(force, params))
    assert out_bf16.shape == (B, 256)
    assert jnp.allclose(out_bf16, ref, atol=5e-2, rtol=5e-2), "bf16-path mismatch vs reference"
    assert float(jnp.mean(jnp.abs(out_bf16 - ref))) < 2e-2

    # (c) Multi-tile + padding path (grid > 1, B not a multiple of TB).
    B2 = 20
    force2 = jax.random.normal(k_in2, (B2, 1), jnp.float32)
    ref2 = force_encoder_ref(force2, params)
    out2 = jax.block_until_ready(
        force_encoder(force2, params, block_b=8, mxu_dtype=jnp.float32))
    assert out2.shape == (B2, 256)
    assert jnp.allclose(out2, ref2, atol=2e-4, rtol=2e-4), "multi-tile mismatch vs reference"

    print("KERNEL_OK")
</pallas_src>

<mosaic_0001>
module attributes {stable_mosaic.version = 11 : i64} {
  func.func @force_encoder_kernel(%arg0: i32, %arg1: memref<8x1xf32, #tpu.memory_space<vmem>>, %arg2: memref<1x64xf32, #tpu.memory_space<vmem>>, %arg3: memref<1x64xf32, #tpu.memory_space<vmem>>, %arg4: memref<1x64xf32, #tpu.memory_space<vmem>>, %arg5: memref<1x64xf32, #tpu.memory_space<vmem>>, %arg6: memref<64x128xf32, #tpu.memory_space<vmem>>, %arg7: memref<1x128xf32, #tpu.memory_space<vmem>>, %arg8: memref<1x128xf32, #tpu.memory_space<vmem>>, %arg9: memref<1x128xf32, #tpu.memory_space<vmem>>, %arg10: memref<128x256xf32, #tpu.memory_space<vmem>>, %arg11: memref<1x256xf32, #tpu.memory_space<vmem>>, %arg12: memref<1x256xf32, #tpu.memory_space<vmem>>, %arg13: memref<1x256xf32, #tpu.memory_space<vmem>>, %arg14: memref<8x256xf32, #tpu.memory_space<vmem>>) attributes {dimension_semantics = [#tpu.dimension_semantics<parallel>], iteration_bounds = array<i64: 1>, scalar_prefetch = 0 : i64, scratch_operands = 0 : i64, tpu.core_type = #tpu.core_type<tc>, window_params = [{transform_indices = @transform_0, window_bounds = array<i64: 8, 1>}, {pipeline_mode = #tpu.pipeline_mode<synchronous>, transform_indices = @transform_1, window_bounds = array<i64: 1, 64>}, {pipeline_mode = #tpu.pipeline_mode<synchronous>, transform_indices = @transform_2, window_bounds = array<i64: 1, 64>}, {pipeline_mode = #tpu.pipeline_mode<synchronous>, transform_indices = @transform_3, window_bounds = array<i64: 1, 64>}, {pipeline_mode = #tpu.pipeline_mode<synchronous>, transform_indices = @transform_4, window_bounds = array<i64: 1, 64>}, {pipeline_mode = #tpu.pipeline_mode<synchronous>, transform_indices = @transform_5, window_bounds = array<i64: 64, 128>}, {pipeline_mode = #tpu.pipeline_mode<synchronous>, transform_indices = @transform_6, window_bounds = array<i64: 1, 128>}, {pipeline_mode = #tpu.pipeline_mode<synchronous>, transform_indices = @transform_7, window_bounds = array<i64: 1, 128>}, {pipeline_mode = #tpu.pipeline_mode<synchronous>, transform_indices = @transform_8, window_bounds = array<i64: 1, 128>}, {pipeline_mode = #tpu.pipeline_mode<synchronous>, transform_indices = @transform_9, window_bounds = array<i64: 128, 256>}, {pipeline_mode = #tpu.pipeline_mode<synchronous>, transform_indices = @transform_10, window_bounds = array<i64: 1, 256>}, {pipeline_mode = #tpu.pipeline_mode<synchronous>, transform_indices = @transform_11, window_bounds = array<i64: 1, 256>}, {pipeline_mode = #tpu.pipeline_mode<synchronous>, transform_indices = @transform_12, window_bounds = array<i64: 1, 256>}, {transform_indices = @transform_13, window_bounds = array<i64: 8, 256>}]} {
    %c0 = arith.constant 0 : index
    %c0_0 = arith.constant 0 : index
    %0 = vector.load %arg1[%c0, %c0_0] : memref<8x1xf32, #tpu.memory_space<vmem>>, vector<8x1xf32>
    %c0_1 = arith.constant 0 : index
    %c0_2 = arith.constant 0 : index
    %1 = vector.load %arg2[%c0_1, %c0_2] : memref<1x64xf32, #tpu.memory_space<vmem>>, vector<1x64xf32>
    %c0_3 = arith.constant 0 : index
    %c0_4 = arith.constant 0 : index
    %2 = vector.load %arg3[%c0_3, %c0_4] : memref<1x64xf32, #tpu.memory_space<vmem>>, vector<1x64xf32>
    %3 = vector.broadcast %0 : vector<8x1xf32> to vector<8x64xf32>
    %4 = vector.broadcast %1 : vector<1x64xf32> to vector<8x64xf32>
    %5 = arith.mulf %3, %4 : vector<8x64xf32>
    %6 = vector.broadcast %2 : vector<1x64xf32> to vector<8x64xf32>
    %7 = arith.addf %5, %6 : vector<8x64xf32>
    %cst = arith.constant dense<0.000000e+00> : vector<1xf32>
    %8 = vector.multi_reduction <add>, %1, %cst [1] : vector<1x64xf32> to vector<1xf32>
    %9 = vector.shape_cast %8 : vector<1xf32> to vector<1x1xf32>
    %cst_5 = arith.constant 6.400000e+01 : f32
    %10 = vector.broadcast %cst_5 : f32 to vector<1x1xf32>
    %11 = arith.divf %9, %10 : vector<1x1xf32>
    %cst_6 = arith.constant dense<0.000000e+00> : vector<1xf32>
    %12 = vector.multi_reduction <add>, %2, %cst_6 [1] : vector<1x64xf32> to vector<1xf32>
    %13 = vector.shape_cast %12 : vector<1xf32> to vector<1x1xf32>
    %cst_7 = arith.constant 6.400000e+01 : f32
    %14 = vector.broadcast %cst_7 : f32 to vector<1x1xf32>
    %15 = arith.divf %13, %14 : vector<1x1xf32>
    %16 = arith.mulf %1, %1 : vector<1x64xf32>
    %cst_8 = arith.constant dense<0.000000e+00> : vector<1xf32>
    %17 = vector.multi_reduction <add>, %16, %cst_8 [1] : vector<1x64xf32> to vector<1xf32>
    %18 = vector.shape_cast %17 : vector<1xf32> to vector<1x1xf32>
    %cst_9 = arith.constant 6.400000e+01 : f32
    %19 = vector.broadcast %cst_9 : f32 to vector<1x1xf32>
    %20 = arith.divf %18, %19 : vector<1x1xf32>
    %21 = arith.mulf %1, %2 : vector<1x64xf32>
    %cst_10 = arith.constant dense<0.000000e+00> : vector<1xf32>
    %22 = vector.multi_reduction <add>, %21, %cst_10 [1] : vector<1x64xf32> to vector<1xf32>
    %23 = vector.shape_cast %22 : vector<1xf32> to vector<1x1xf32>
    %cst_11 = arith.constant 6.400000e+01 : f32
    %24 = vector.broadcast %cst_11 : f32 to vector<1x1xf32>
    %25 = arith.divf %23, %24 : vector<1x1xf32>
    %26 = arith.mulf %2, %2 : vector<1x64xf32>
    %cst_12 = arith.constant dense<0.000000e+00> : vector<1xf32>
    %27 = vector.multi_reduction <add>, %26, %cst_12 [1] : vector<1x64xf32> to vector<1xf32>
    %28 = vector.shape_cast %27 : vector<1xf32> to vector<1x1xf32>
    %cst_13 = arith.constant 6.400000e+01 : f32
    %29 = vector.broadcast %cst_13 : f32 to vector<1x1xf32>
    %30 = arith.divf %28, %29 : vector<1x1xf32>
    %31 = vector.broadcast %11 : vector<1x1xf32> to vector<8x1xf32>
    %32 = arith.mulf %0, %31 : vector<8x1xf32>
    %33 = vector.broadcast %15 : vector<1x1xf32> to vector<8x1xf32>
    %34 = arith.addf %32, %33 : vector<8x1xf32>
    %35 = arith.mulf %0, %0 : vector<8x1xf32>
    %36 = vector.broadcast %20 : vector<1x1xf32> to vector<8x1xf32>
    %37 = arith.mulf %35, %36 : vector<8x1xf32>
    %cst_14 = arith.constant 2.000000e+00 : f32
    %38 = vector.broadcast %cst_14 : f32 to vector<8x1xf32>
    %39 = arith.mulf %38, %0 : vector<8x1xf32>
    %40 = vector.broadcast %25 : vector<1x1xf32> to vector<8x1xf32>
    %41 = arith.mulf %39, %40 : vector<8x1xf32>
    %42 = arith.addf %37, %41 : vector<8x1xf32>
    %43 = vector.broadcast %30 : vector<1x1xf32> to vector<8x1xf32>
    %44 = arith.addf %42, %43 : vector<8x1xf32>
    %45 = arith.mulf %34, %34 : vector<8x1xf32>
    %46 = arith.subf %44, %45 : vector<8x1xf32>
    %cst_15 = arith.constant 0.000000e+00 : f32
    %47 = vector.broadcast %cst_15 : f32 to vector<8x1xf32>
    %48 = arith.maximumf %46, %47 : vector<8x1xf32>
    %c0_16 = arith.constant 0 : index
    %c0_17 = arith.constant 0 : index
    %49 = vector.load %arg4[%c0_16, %c0_17] : memref<1x64xf32, #tpu.memory_space<vmem>>, vector<1x64xf32>
    %cst_18 = arith.constant 9.99999974E-6 : f32
    %50 = vector.broadcast %cst_18 : f32 to vector<8x1xf32>
    %51 = arith.addf %48, %50 : vector<8x1xf32>
    %52 = math.rsqrt %51 : vector<8x1xf32>
    %53 = vector.broadcast %49 : vector<1x64xf32> to vector<8x64xf32>
    %54 = vector.broadcast %52 : vector<8x1xf32> to vector<8x64xf32>
    %55 = arith.mulf %53, %54 : vector<8x64xf32>
    %56 = arith.mulf %7, %55 : vector<8x64xf32>
    %c0_19 = arith.constant 0 : index
    %c0_20 = arith.constant 0 : index
    %57 = vector.load %arg5[%c0_19, %c0_20] : memref<1x64xf32, #tpu.memory_space<vmem>>, vector<1x64xf32>
    %58 = vector.broadcast %34 : vector<8x1xf32> to vector<8x64xf32>
    %59 = arith.mulf %58, %55 : vector<8x64xf32>
    %60 = vector.broadcast %57 : vector<1x64xf32> to vector<8x64xf32>
    %61 = arith.subf %60, %59 : vector<8x64xf32>
    %62 = arith.addf %56, %61 : vector<8x64xf32>
    %cst_21 = arith.constant 0.000000e+00 : f32
    %63 = vector.broadcast %cst_21 : f32 to vector<8x64xf32>
    %64 = arith.maximumf %62, %63 : vector<8x64xf32>
    %c0_22 = arith.constant 0 : index
    %c0_23 = arith.constant 0 : index
    %65 = vector.load %arg6[%c0_22, %c0_23] : memref<64x128xf32, #tpu.memory_space<vmem>>, vector<64x128xf32>
    %cst_24 = arith.constant dense<0.000000e+00> : vector<8x128xf32>
    %66 = tpu.matmul %64, %65, %cst_24 {dimension_numbers = #tpu.dot_dimension_numbers<[1], [0], [0], [1], [0, 0, 1, 1], [], []>} : vector<8x64xf32>, vector<64x128xf32>, vector<8x128xf32> -> vector<8x128xf32>
    %c0_25 = arith.constant 0 : index
    %c0_26 = arith.constant 0 : index
    %67 = vector.load %arg7[%c0_25, %c0_26] : memref<1x128xf32, #tpu.memory_space<vmem>>, vector<1x128xf32>
    %68 = vector.broadcast %67 : vector<1x128xf32> to vector<8x128xf32>
    %69 = arith.addf %66, %68 : vector<8x128xf32>
    %c0_27 = arith.constant 0 : index
    %c0_28 = arith.constant 0 : index
    %70 = vector.load %arg8[%c0_27, %c0_28] : memref<1x128xf32, #tpu.memory_space<vmem>>, vector<1x128xf32>
    %c0_29 = arith.constant 0 : index
    %c0_30 = arith.constant 0 : index
    %71 = vector.load %arg9[%c0_29, %c0_30] : memref<1x128xf32, #tpu.memory_space<vmem>>, vector<1x128xf32>
    %cst_31 = arith.constant dense<0.000000e+00> : vector<8xf32>
    %72 = vector.multi_reduction <add>, %69, %cst_31 [1] : vector<8x128xf32> to vector<8xf32>
    %73 = vector.shape_cast %72 : vector<8xf32> to vector<8x1xf32>
    %cst_32 = arith.constant 1.280000e+02 : f32
    %74 = vector.broadcast %cst_32 : f32 to vector<8x1xf32>
    %75 = arith.divf %73, %74 : vector<8x1xf32>
    %76 = arith.mulf %69, %69 : vector<8x128xf32>
    %cst_33 = arith.constant dense<0.000000e+00> : vector<8xf32>
    %77 = vector.multi_reduction <add>, %76, %cst_33 [1] : vector<8x128xf32> to vector<8xf32>
    %78 = vector.shape_cast %77 : vector<8xf32> to vector<8x1xf32>
    %cst_34 = arith.constant 1.280000e+02 : f32
    %79 = vector.broadcast %cst_34 : f32 to vector<8x1xf32>
    %80 = arith.divf %78, %79 : vector<8x1xf32>
    %81 = arith.mulf %75, %75 : vector<8x1xf32>
    %82 = arith.subf %80, %81 : vector<8x1xf32>
    %cst_35 = arith.constant 0.000000e+00 : f32
    %83 = vector.broadcast %cst_35 : f32 to vector<8x1xf32>
    %84 = arith.maximumf %82, %83 : vector<8x1xf32>
    %cst_36 = arith.constant 9.99999974E-6 : f32
    %85 = vector.broadcast %cst_36 : f32 to vector<8x1xf32>
    %86 = arith.addf %84, %85 : vector<8x1xf32>
    %87 = math.rsqrt %86 : vector<8x1xf32>
    %88 = vector.broadcast %70 : vector<1x128xf32> to vector<8x128xf32>
    %89 = vector.broadcast %87 : vector<8x1xf32> to vector<8x128xf32>
    %90 = arith.mulf %88, %89 : vector<8x128xf32>
    %91 = arith.mulf %69, %90 : vector<8x128xf32>
    %92 = vector.broadcast %75 : vector<8x1xf32> to vector<8x128xf32>
    %93 = arith.mulf %92, %90 : vector<8x128xf32>
    %94 = vector.broadcast %71 : vector<1x128xf32> to vector<8x128xf32>
    %95 = arith.subf %94, %93 : vector<8x128xf32>
    %96 = arith.addf %91, %95 : vector<8x128xf32>
    %cst_37 = arith.constant 0.000000e+00 : f32
    %97 = vector.broadcast %cst_37 : f32 to vector<8x128xf32>
    %98 = arith.maximumf %96, %97 : vector<8x128xf32>
    %c0_38 = arith.constant 0 : index
    %c0_39 = arith.constant 0 : index
    %99 = vector.load %arg10[%c0_38, %c0_39] : memref<128x256xf32, #tpu.memory_space<vmem>>, vector<128x256xf32>
    %cst_40 = arith.constant dense<0.000000e+00> : vector<8x256xf32>
    %100 = tpu.matmul %98, %99, %cst_40 {dimension_numbers = #tpu.dot_dimension_numbers<[1], [0], [0], [1], [0, 0, 1, 1], [], []>} : vector<8x128xf32>, vector<128x256xf32>, vector<8x256xf32> -> vector<8x256xf32>
    %c0_41 = arith.constant 0 : index
    %c0_42 = arith.constant 0 : index
    %101 = vector.load %arg11[%c0_41, %c0_42] : memref<1x256xf32, #tpu.memory_space<vmem>>, vector<1x256xf32>
    %102 = vector.broadcast %101 : vector<1x256xf32> to vector<8x256xf32>
    %103 = arith.addf %100, %102 : vector<8x256xf32>
    %c0_43 = arith.constant 0 : index
    %c0_44 = arith.constant 0 : index
    %104 = vector.load %arg12[%c0_43, %c0_44] : memref<1x256xf32, #tpu.memory_space<vmem>>, vector<1x256xf32>
    %c0_45 = arith.constant 0 : index
    %c0_46 = arith.constant 0 : index
    %105 = vector.load %arg13[%c0_45, %c0_46] : memref<1x256xf32, #tpu.memory_space<vmem>>, vector<1x256xf32>
    %cst_47 = arith.constant dense<0.000000e+00> : vector<8xf32>
    %106 = vector.multi_reduction <add>, %103, %cst_47 [1] : vector<8x256xf32> to vector<8xf32>
    %107 = vector.shape_cast %106 : vector<8xf32> to vector<8x1xf32>
    %cst_48 = arith.constant 2.560000e+02 : f32
    %108 = vector.broadcast %cst_48 : f32 to vector<8x1xf32>
    %109 = arith.divf %107, %108 : vector<8x1xf32>
    %110 = arith.mulf %103, %103 : vector<8x256xf32>
    %cst_49 = arith.constant dense<0.000000e+00> : vector<8xf32>
    %111 = vector.multi_reduction <add>, %110, %cst_49 [1] : vector<8x256xf32> to vector<8xf32>
    %112 = vector.shape_cast %111 : vector<8xf32> to vector<8x1xf32>
    %cst_50 = arith.constant 2.560000e+02 : f32
    %113 = vector.broadcast %cst_50 : f32 to vector<8x1xf32>
    %114 = arith.divf %112, %113 : vector<8x1xf32>
    %115 = arith.mulf %109, %109 : vector<8x1xf32>
    %116 = arith.subf %114, %115 : vector<8x1xf32>
    %cst_51 = arith.constant 0.000000e+00 : f32
    %117 = vector.broadcast %cst_51 : f32 to vector<8x1xf32>
    %118 = arith.maximumf %116, %117 : vector<8x1xf32>
    %cst_52 = arith.constant 9.99999974E-6 : f32
    %119 = vector.broadcast %cst_52 : f32 to vector<8x1xf32>
    %120 = arith.addf %118, %119 : vector<8x1xf32>
    %121 = math.rsqrt %120 : vector<8x1xf32>
    %122 = vector.broadcast %104 : vector<1x256xf32> to vector<8x256xf32>
    %123 = vector.broadcast %121 : vector<8x1xf32> to vector<8x256xf32>
    %124 = arith.mulf %122, %123 : vector<8x256xf32>
    %125 = arith.mulf %103, %124 : vector<8x256xf32>
    %126 = vector.broadcast %109 : vector<8x1xf32> to vector<8x256xf32>
    %127 = arith.mulf %126, %124 : vector<8x256xf32>
    %128 = vector.broadcast %105 : vector<1x256xf32> to vector<8x256xf32>
    %129 = arith.subf %128, %127 : vector<8x256xf32>
    %130 = arith.addf %125, %129 : vector<8x256xf32>
    %cst_53 = arith.constant 0.000000e+00 : f32
    %131 = vector.broadcast %cst_53 : f32 to vector<8x256xf32>
    %132 = arith.maximumf %130, %131 : vector<8x256xf32>
    %c0_54 = arith.constant 0 : index
    %c0_55 = arith.constant 0 : index
    %133 = vector.load %arg14[%c0_54, %c0_55] : memref<8x256xf32, #tpu.memory_space<vmem>>, vector<8x256xf32>
    tpu.vector_store %arg14[%c0_54, %c0_55], %132 {strides = array<i32>} : memref<8x256xf32, #tpu.memory_space<vmem>>, vector<8x256xf32>,
    return
  }
  func.func @transform_0(%arg0: i32) -> (i32, i32) {
    %c0_i32 = arith.constant 0 : i32
    %c0_i32_0 = arith.constant 0 : i32
    return %arg0, %c0_i32 : i32, i32
  }
  func.func @transform_1(%arg0: i32) -> (i32, i32) {
    %c0_i32 = arith.constant 0 : i32
    %c0_i32_0 = arith.constant 0 : i32
    %c0_i32_1 = arith.constant 0 : i32
    return %c0_i32, %c0_i32_0 : i32, i32
  }
  func.func @transform_2(%arg0: i32) -> (i32, i32) {
    %c0_i32 = arith.constant 0 : i32
    %c0_i32_0 = arith.constant 0 : i32
    %c0_i32_1 = arith.constant 0 : i32
    return %c0_i32, %c0_i32_0 : i32, i32
  }
  func.func @transform_3(%arg0: i32) -> (i32, i32) {
    %c0_i32 = arith.constant 0 : i32
    %c0_i32_0 = arith.constant 0 : i32
    %c0_i32_1 = arith.constant 0 : i32
    return %c0_i32, %c0_i32_0 : i32, i32
  }
  func.func @transform_4(%arg0: i32) -> (i32, i32) {
    %c0_i32 = arith.constant 0 : i32
    %c0_i32_0 = arith.constant 0 : i32
    %c0_i32_1 = arith.constant 0 : i32
    return %c0_i32, %c0_i32_0 : i32, i32
  }
  func.func @transform_5(%arg0: i32) -> (i32, i32) {
    %c0_i32 = arith.constant 0 : i32
    %c0_i32_0 = arith.constant 0 : i32
    %c0_i32_1 = arith.constant 0 : i32
    return %c0_i32, %c0_i32_0 : i32, i32
  }
  func.func @transform_6(%arg0: i32) -> (i32, i32) {
    %c0_i32 = arith.constant 0 : i32
    %c0_i32_0 = arith.constant 0 : i32
    %c0_i32_1 = arith.constant 0 : i32
    return %c0_i32, %c0_i32_0 : i32, i32
  }
  func.func @transform_7(%arg0: i32) -> (i32, i32) {
    %c0_i32 = arith.constant 0 : i32
    %c0_i32_0 = arith.constant 0 : i32
    %c0_i32_1 = arith.constant 0 : i32
    return %c0_i32, %c0_i32_0 : i32, i32
  }
  func.func @transform_8(%arg0: i32) -> (i32, i32) {
    %c0_i32 = arith.constant 0 : i32
    %c0_i32_0 = arith.constant 0 : i32
    %c0_i32_1 = arith.constant 0 : i32
    return %c0_i32, %c0_i32_0 : i32, i32
  }
  func.func @transform_9(%arg0: i32) -> (i32, i32) {
    %c0_i32 = arith.constant 0 : i32
    %c0_i32_0 = arith.constant 0 : i32
    %c0_i32_1 = arith.constant 0 : i32
    return %c0_i32, %c0_i32_0 : i32, i32
  }
  func.func @transform_10(%arg0: i32) -> (i32, i32) {
    %c0_i32 = arith.constant 0 : i32
    %c0_i32_0 = arith.constant 0 : i32
    %c0_i32_1 = arith.constant 0 : i32
    return %c0_i32, %c0_i32_0 : i32, i32
  }
  func.func @transform_11(%arg0: i32) -> (i32, i32) {
    %c0_i32 = arith.constant 0 : i32
    %c0_i32_0 = arith.constant 0 : i32
    %c0_i32_1 = arith.constant 0 : i32
    return %c0_i32, %c0_i32_0 : i32, i32
  }
  func.func @transform_12(%arg0: i32) -> (i32, i32) {
    %c0_i32 = arith.constant 0 : i32
    %c0_i32_0 = arith.constant 0 : i32
    %c0_i32_1 = arith.constant 0 : i32
    return %c0_i32, %c0_i32_0 : i32, i32
  }
  func.func @transform_13(%arg0: i32) -> (i32, i32) {
    %c0_i32 = arith.constant 0 : i32
    %c0_i32_0 = arith.constant 0 : i32
    return %arg0, %c0_i32 : i32, i32
  }
}

</mosaic_0001>

<llo_original>
// kernel: tpu_custom_call.1
$region0: #{tpu_custom_call.1}
  #allocation0 [shape = 'u32[]', space=smem, size = 0x4, offset = 0x4, fixed_abs, tag = 'smem constant byte address 0x4 - core index']
  #allocation1 [shape = 'u32[72,128]{1,0:T(1,128)}', space=vmem, size = 0x9000, scoped, tag = 'internal scratch']
  %s0 = inlined_call_operand.vmem [shape: f32[8,1], index: 0, kind: input, shape index: {}]
  %s1 = inlined_call_operand.vmem [shape: f32[1,64], index: 1, kind: input, shape index: {}]
  %s2 = inlined_call_operand.vmem [shape: f32[1,64], index: 2, kind: input, shape index: {}]
  %s3 = inlined_call_operand.vmem [shape: f32[1,64], index: 3, kind: input, shape index: {}]
  %s4 = inlined_call_operand.vmem [shape: f32[1,64], index: 4, kind: input, shape index: {}]
  %s5 = inlined_call_operand.hbm [shape: f32[64,128], index: 5, kind: input, shape index: {}]
  %s6 = inlined_call_operand.vmem [shape: f32[1,128], index: 6, kind: input, shape index: {}]
  %s7 = inlined_call_operand.vmem [shape: f32[1,128], index: 7, kind: input, shape index: {}]
  %s8 = inlined_call_operand.vmem [shape: f32[1,128], index: 8, kind: input, shape index: {}]
  %s9 = inlined_call_operand.hbm [shape: f32[128,256], index: 9, kind: input, shape index: {}]
  %s10 = inlined_call_operand.vmem [shape: f32[1,256], index: 10, kind: input, shape index: {}]
  %s11 = inlined_call_operand.vmem [shape: f32[1,256], index: 11, kind: input, shape index: {}]
  %s12 = inlined_call_operand.vmem [shape: f32[1,256], index: 12, kind: input, shape index: {}]
  %s13 = inlined_call_operand.hbm [shape: f32[8,256], index: 13, kind: output, shape index: {}]
  %s14 = sld [smem:[#allocation0]]
  $region70: #{tpu_custom_call.1} parent=0
    _
  %s16 = ssub.s32 1, %s14
  %s17 = scalar_select 0, %s16, %s14
  $region1: #{tpu_custom_call.1} parent=0
    #allocation2 [shape = 'u8[32768]{0}', space=vmem, size = 0x8000, scoped, tag = 'input window, operand 5, single buffered']
    #allocation3 [shape = 's32[1]{0}', space=sflag, size = 0x4, scoped, tag = 'scoped memory for tpu_custom_call.1']
    #allocation4 [shape = 's32[1]{0}', space=sflag, size = 0x4, scoped, tag = 'scoped memory for tpu_custom_call.1']
    #allocation5 [shape = 'u8[131072]{0}', space=vmem, size = 0x20000, scoped, tag = 'input window, operand 9, single buffered']
    #allocation6 [shape = 's32[1]{0}', space=sflag, size = 0x4, scoped, tag = 'scoped memory for tpu_custom_call.1']
    #allocation7 [shape = 'u8[8192]{0}', space=vmem, size = 0x2000, scoped, tag = 'output window, operand 0, single buffered']
    %18 = vsyncpa [#allocation3], 0
    %19 = vsyncpa [#allocation6], 0
    %20 = vsyncpa [#allocation4], 0
    // Predicated region
    $region2: #{tpu_custom_call.1} parent=1 // pred_check
      _
    $region3: #{tpu_custom_call.1} parent=1 // pred_check_branch
      %22 = sbr.rel (0) target = $region5
    $region4: #{tpu_custom_call.1} parent=1 // pred_region
      _
    $region5: #{tpu_custom_call.1} parent=1 // pred_fallthru
      _
    // Predicated region
    $region6: #{tpu_custom_call.1} parent=1 // pred_check
      _
    $region7: #{tpu_custom_call.1} parent=1 // pred_check_branch
      %24 = sbr.rel (0) target = $region9
    $region8: #{tpu_custom_call.1} parent=1 // pred_region
      _
    $region9: #{tpu_custom_call.1} parent=1 // pred_fallthru
      _
    // Predicated region
    $region10: #{tpu_custom_call.1} parent=1 // pred_check
      _
    $region11: #{tpu_custom_call.1} parent=1 // pred_check_branch
      %26 = sbr.rel (0) target = $region13
    $region12: #{tpu_custom_call.1} parent=1 // pred_region
      _
    $region13: #{tpu_custom_call.1} parent=1 // pred_fallthru
      _
    // Predicated region
    $region14: #{tpu_custom_call.1} parent=1 // pred_check
      _
    $region15: #{tpu_custom_call.1} parent=1 // pred_check_branch
      %28 = sbr.rel (0) target = $region17
    $region16: #{tpu_custom_call.1} parent=1 // pred_region
      _
    $region17: #{tpu_custom_call.1} parent=1 // pred_fallthru
      _
    // Predicated region
    $region18: #{tpu_custom_call.1} parent=1 // pred_check
      _
    $region19: #{tpu_custom_call.1} parent=1 // pred_check_branch
      %30 = sbr.rel (0) target = $region21
    $region20: #{tpu_custom_call.1} parent=1 // pred_region
      _
    $region21: #{tpu_custom_call.1} parent=1 // pred_fallthru
      _
    // Predicated region
    $region22: #{tpu_custom_call.1} parent=1 // pred_check
      _
    $region23: #{tpu_custom_call.1} parent=1 // pred_check_branch
      %32 = sbr.rel (0) target = $region25
    $region24: #{tpu_custom_call.1} parent=1 // pred_region
      %34 = vsyncadd [#allocation3], 0
      %s35 = sshll.u32 %s5, 4
      %s36 = int_to_ptr.hbm [resolvable:$true] %s35
      %s37 = sshll.u32 [#allocation2], 4
      %s38 = int_to_ptr.vmem [resolvable:$true] %s37
      %43 = dma.hbm_to_vmem [thread:$0]  %s36, 1024, %s38, [#allocation3], 128, 128, 8
    $region25: #{tpu_custom_call.1} parent=1 // pred_fallthru
      _
    // Predicated region
    $region26: #{tpu_custom_call.1} parent=1 // pred_check
      _
    $region27: #{tpu_custom_call.1} parent=1 // pred_check_branch
      %45 = sbr.rel (0) target = $region29
    $region28: #{tpu_custom_call.1} parent=1 // pred_region
      _
    $region29: #{tpu_custom_call.1} parent=1 // pred_fallthru
      _
    // Predicated region
    $region30: #{tpu_custom_call.1} parent=1 // pred_check
      _
    $region31: #{tpu_custom_call.1} parent=1 // pred_check_branch
      %47 = sbr.rel (0) target = $region33
    $region32: #{tpu_custom_call.1} parent=1 // pred_region
      _
    $region33: #{tpu_custom_call.1} parent=1 // pred_fallthru
      _
    // Predicated region
    $region34: #{tpu_custom_call.1} parent=1 // pred_check
      _
    $region35: #{tpu_custom_call.1} parent=1 // pred_check_branch
      %49 = sbr.rel (0) target = $region37
    $region36: #{tpu_custom_call.1} parent=1 // pred_region
      _
    $region37: #{tpu_custom_call.1} parent=1 // pred_fallthru
      _
    // Predicated region
    $region38: #{tpu_custom_call.1} parent=1 // pred_check
      _
    $region39: #{tpu_custom_call.1} parent=1 // pred_check_branch
      %51 = sbr.rel (0) target = $region41
    $region40: #{tpu_custom_call.1} parent=1 // pred_region
      %53 = vsyncadd [#allocation6], 0
      %s54 = sshll.u32 %s9, 4
      %s55 = int_to_ptr.hbm [resolvable:$true] %s54
      %s56 = sshll.u32 [#allocation5], 4
      %s57 = int_to_ptr.vmem [resolvable:$true] %s56
      %62 = dma.hbm_to_vmem [thread:$0]  %s55, 4096, %s57, [#allocation6], 256, 256, 16
    $region41: #{tpu_custom_call.1} parent=1 // pred_fallthru
      _
    // Predicated region
    $region42: #{tpu_custom_call.1} parent=1 // pred_check
      _
    $region43: #{tpu_custom_call.1} parent=1 // pred_check_branch
      %64 = sbr.rel (0) target = $region45
    $region44: #{tpu_custom_call.1} parent=1 // pred_region
      _
    $region45: #{tpu_custom_call.1} parent=1 // pred_fallthru
      _
    // Predicated region
    $region46: #{tpu_custom_call.1} parent=1 // pred_check
      _
    $region47: #{tpu_custom_call.1} parent=1 // pred_check_branch
      %66 = sbr.rel (0) target = $region49
    $region48: #{tpu_custom_call.1} parent=1 // pred_region
      _
    $region49: #{tpu_custom_call.1} parent=1 // pred_fallthru
      _
    // Predicated region
    $region50: #{tpu_custom_call.1} parent=1 // pred_check
      _
    $region51: #{tpu_custom_call.1} parent=1 // pred_check_branch
      %68 = sbr.rel (0) target = $region53
    $region52: #{tpu_custom_call.1} parent=1 // pred_region
      _
    $region53: #{tpu_custom_call.1} parent=1 // pred_fallthru
      _
    // Predicated region
    $region54: #{tpu_custom_call.1} parent=1 // pred_check
      _
    $region55: #{tpu_custom_call.1} parent=1 // pred_check_branch
      %70 = sbr.rel (0) target = $region57
    $region56: #{tpu_custom_call.1} parent=1 // pred_region
      %72 = dma.done [#allocation3], 1024
    $region57: #{tpu_custom_call.1} parent=1 // pred_fallthru
      _
    // Predicated region
    $region58: #{tpu_custom_call.1} parent=1 // pred_check
      _
    $region59: #{tpu_custom_call.1} parent=1 // pred_check_branch
      %74 = sbr.rel (0) target = $region61
    $region60: #{tpu_custom_call.1} parent=1 // pred_region
      %76 = dma.done [#allocation6], 4096
    $region61: #{tpu_custom_call.1} parent=1 // pred_fallthru
      _
    %v77 = vld [vmem:[%s0] sm:$0xff]
    %v78 = vld [vmem:[%s1] sm:$0x1]
    %v79 = vld [vmem:[%s2] sm:$0x1]
    %81 = vset.pattern.permute.xlu0 0
    %82 = vperm.xlu0 %81, %v77
    %v83 = vpop.permute.xlu0 %82
    %v86 = vperm.slane %v78, 0
    %v88 = vmul.f32 %v83, %v86
    %v90 = vperm.slane %v79, 0
    %v92 = vadd.f32 %v88, %v90
    %vm93 = vcmask 516096
    %v94 = vsel %vm93, %v78, 0.0
    %95 = vadd.xlane.f32.xlu0 %v94
    %v96 = vpop.xlane.xlu0 %95
    %v97 = vrcp.pop 64.0
    %v98 = vmul.f32 64.0, %v97
    %v99 = vsub.f32 1.0, %v98
    %v100 = vmul.f32 %v97, %v99
    %v101 = vadd.f32 %v97, %v100
    %vm102 = vweird.f32 %v97
    %v103 = vsel %vm102, %v97, %v101
    %v104 = vmul.f32 %v96, %v103
    %v105 = vsel %vm93, %v79, 0.0
    %106 = vadd.xlane.f32.xlu0 %v105
    %v107 = vpop.xlane.xlu0 %106
    %v108 = vmul.f32 %v107, %v103
    %v109 = vmul.f32 %v78, %v78
    %v110 = vsel %vm93, %v109, 0.0
    %111 = vadd.xlane.f32.xlu0 %v110
    %v112 = vpop.xlane.xlu0 %111
    %v113 = vmul.f32 %v112, %v103
    %v114 = vmul.f32 %v78, %v79
    %v115 = vsel %vm93, %v114, 0.0
    %116 = vadd.xlane.f32.xlu0 %v115
    %v117 = vpop.xlane.xlu0 %116
    %v118 = vmul.f32 %v117, %v103
    %v119 = vmul.f32 %v79, %v79
    %v120 = vsel %vm93, %v119, 0.0
    %121 = vadd.xlane.f32.xlu0 %v120
    %v122 = vpop.xlane.xlu0 %121
    %v123 = vmul.f32 %v122, %v103
    %v124 = vperm.slane %v104, 0
    %v125 = vmul.f32 %v77, %v124
    %v126 = vperm.slane %v108, 0
    %v127 = vadd.f32 %v125, %v126
    %v128 = vmul.f32 %v77, %v77
    %v129 = vperm.slane %v113, 0
    %v130 = vmul.f32 %v128, %v129
    %v131 = vmul.f32 %v77, 2.0
    %v132 = vperm.slane %v118, 0
    %v133 = vmul.f32 %v131, %v132
    %v134 = vadd.f32 %v130, %v133
    %v135 = vperm.slane %v123, 0
    %v136 = vadd.f32 %v134, %v135
    %v137 = vmul.f32 %v127, %v127
    %v138 = vsub.f32 %v136, %v137
    %v139 = vmax.f32 %v138, 0.0
    %v140 = vld [vmem:[%s3] sm:$0x1]
    %v141 = vadd.f32 %v139, 1e-05
    %v142 = vrsqrt.pop %v141
    %v143 = vmul.f32 %v142, %v141
    %v144 = vmul.f32 %v143, %v142
    %v145 = vmul.f32 0.5, %v144
    %v146 = vsub.f32 1.5, %v145
    %v147 = vmul.f32 %v142, %v146
    %vm148 = vweird.f32 %v141
    %vm149 = vweird.f32 %v142
    %vm150 = vmor %vm148, %vm149
    %v151 = vsel %vm150, %v142, %v147
    %v153 = vperm.slane %v140, 0
    %156 = vset.pattern.permute.xlu0 0
    %157 = vperm.xlu0 %156, %v151
    %v158 = vpop.permute.xlu0 %157
    %v160 = vmul.f32 %v153, %v158
    %v161 = vmul.f32 %v92, %v160
    %v162 = vld [vmem:[%s4] sm:$0x1]
    %164 = vset.pattern.permute.xlu0 0
    %165 = vperm.xlu0 %164, %v127
    %v166 = vpop.permute.xlu0 %165
    %v168 = vmul.f32 %v166, %v160
    %v170 = vperm.slane %v162, 0
    %v172 = vsub.f32 %v170, %v168
    %v173 = vadd.f32 %v161, %v172
    %v174 = vmax.f32 %v173, 0.0
    %v175 = vld [vmem:[#allocation2] sm:$0xff]
    %v176 = vld [vmem:[#allocation2 + $0x8] sm:$0xff]
    %v177 = vld [vmem:[#allocation2 + $0x10] sm:$0xff]
    %v178 = vld [vmem:[#allocation2 + $0x18] sm:$0xff]
    %v179 = vld [vmem:[#allocation2 + $0x20] sm:$0xff]
    %v180 = vld [vmem:[#allocation2 + $0x28] sm:$0xff]
    %v181 = vld [vmem:[#allocation2 + $0x30] sm:$0xff]
    %v182 = vld [vmem:[#allocation2 + $0x38] sm:$0xff]
    %v183 = vld [vmem:[%s6] sm:$0x1]
    %v185 = vperm.slane %v183, 0
    %vm187 = vcmask 523264
    %v189 = vsel %vm187, %v174, 0
    %191 = vmatpush.msra.mxu0 0.0
    %192 = vmatpush.msra.mxu0 0.0
    %193 = vmatpush.msra.mxu0 0.0
    %194 = vmatpush.msra.mxu0 0.0
    %195 = vmatpush.msra.mxu0 0.0
    %196 = vmatpush.msra.mxu0 0.0
    %197 = vmatpush.msra.mxu0 0.0
    %198 = vmatpush.msra.mxu0 0.0
    %199 = vmatpush.msra.mxu0 %v182
    %200 = vmatpush.msra.mxu0 %v181
    %201 = vmatpush.msra.mxu0 %v180
    %202 = vmatpush.msra.mxu0 %v179
    %203 = vmatpush.msra.mxu0 %v178
    %204 = vmatpush.msra.mxu0 %v177
    %205 = vmatpush.msra.mxu0 %v176
    %206 = vmatpush.msra.mxu0 %v175
    %207 = vmatmul.f32.gmra.mxu0 %v189
    %v208 = vpop.f32.mrf.mxu0
    %v209 = vadd.f32 %v185, %v208
    %210 = vdwg.mxu0
    %v211 = vld [vmem:[%s7] sm:$0x1]
    %v212 = vld [vmem:[%s8] sm:$0x1]
    %213 = vadd.xlane.f32.xlu0 %v209
    %v214 = vpop.xlane.xlu0 %213
    %v215 = vrcp.pop 128.0
    %v216 = vmul.f32 128.0, %v215
    %v217 = vsub.f32 1.0, %v216
    %v218 = vmul.f32 %v215, %v217
    %v219 = vadd.f32 %v215, %v218
    %vm220 = vweird.f32 %v215
    %v221 = vsel %vm220, %v215, %v219
    %v222 = vmul.f32 %v214, %v221
    %v223 = vmul.f32 %v209, %v209
    %224 = vadd.xlane.f32.xlu0 %v223
    %v225 = vpop.xlane.xlu0 %224
    %v226 = vmul.f32 %v225, %v221
    %v227 = vmul.f32 %v222, %v222
    %v228 = vsub.f32 %v226, %v227
    %v229 = vmax.f32 %v228, 0.0
    %v230 = vadd.f32 %v229, 1e-05
    %v231 = vrsqrt.pop %v230
    %v232 = vmul.f32 %v231, %v230
    %v233 = vmul.f32 %v232, %v231
    %v234 = vmul.f32 0.5, %v233
    %v235 = vsub.f32 1.5, %v234
    %v236 = vmul.f32 %v231, %v235
    %vm237 = vweird.f32 %v230
    %vm238 = vweird.f32 %v231
    %vm239 = vmor %vm237, %vm238
    %v240 = vsel %vm239, %v231, %v236
    %v242 = vperm.slane %v211, 0
    %v244 = vmul.f32 %v242, %v240
    %v245 = vmul.f32 %v209, %v244
    %v246 = vmul.f32 %v222, %v244
    %v248 = vperm.slane %v212, 0
    %v250 = vsub.f32 %v248, %v246
    %v251 = vadd.f32 %v245, %v250
    %v252 = vmax.f32 %v251, 0.0
    %v253 = vld [vmem:[#allocation5] sm:$0xff]
    %v254 = vld [vmem:[#allocation5 + $0x8] sm:$0xff]
    %v255 = vld [vmem:[#allocation5 + $0x10] sm:$0xff]
    %v256 = vld [vmem:[#allocation5 + $0x18] sm:$0xff]
    %v257 = vld [vmem:[#allocation5 + $0x20] sm:$0xff]
    %v258 = vld [vmem:[#allocation5 + $0x28] sm:$0xff]
    %v259 = vld [vmem:[#allocation5 + $0x30] sm:$0xff]
    %v260 = vld [vmem:[#allocation5 + $0x38] sm:$0xff]
    %v261 = vld [vmem:[#allocation5 + $0x40] sm:$0xff]
    %v262 = vld [vmem:[#allocation5 + $0x48] sm:$0xff]
    %v263 = vld [vmem:[#allocation5 + $0x50] sm:$0xff]
    %v264 = vld [vmem:[#allocation5 + $0x58] sm:$0xff]
    %v265 = vld [vmem:[#allocation5 + $0x60] sm:$0xff]
    %v266 = vld [vmem:[#allocation5 + $0x68] sm:$0xff]
    %v267 = vld [vmem:[#allocation5 + $0x70] sm:$0xff]
    %v268 = vld [vmem:[#allocation5 + $0x78] sm:$0xff]
    %v269 = vld [vmem:[#allocation5 + $0x80] sm:$0xff]
    %v270 = vld [vmem:[#allocation5 + $0x88] sm:$0xff]
    %v271 = vld [vmem:[#allocation5 + $0x90] sm:$0xff]
    %v272 = vld [vmem:[#allocation5 + $0x98] sm:$0xff]
    %v273 = vld [vmem:[#allocation5 + $0xa0] sm:$0xff]
    %v274 = vld [vmem:[#allocation5 + $0xa8] sm:$0xff]
    %v275 = vld [vmem:[#allocation5 + $0xb0] sm:$0xff]
    %v276 = vld [vmem:[#allocation5 + $0xb8] sm:$0xff]
    %v277 = vld [vmem:[#allocation5 + $0xc0] sm:$0xff]
    %v278 = vld [vmem:[#allocation5 + $0xc8] sm:$0xff]
    %v279 = vld [vmem:[#allocation5 + $0xd0] sm:$0xff]
    %v280 = vld [vmem:[#allocation5 + $0xd8] sm:$0xff]
    %v281 = vld [vmem:[#allocation5 + $0xe0] sm:$0xff]
    %v282 = vld [vmem:[#allocation5 + $0xe8] sm:$0xff]
    %v283 = vld [vmem:[#allocation5 + $0xf0] sm:$0xff]
    %v284 = vld [vmem:[#allocation5 + $0xf8] sm:$0xff]
    %v285 = vld [vmem:[%s10] sm:$0x3]
    %v287 = vperm.slane %v285, 0
    %v288 = vperm.slane %v285, 1
    %291 = vmatpush.msra.mxu0 %v283
    %292 = vmatpush.msra.mxu0 %v281
    %293 = vmatpush.msra.mxu0 %v279
    %294 = vmatpush.msra.mxu0 %v277
    %295 = vmatpush.msra.mxu0 %v275
    %296 = vmatpush.msra.mxu0 %v273
    %297 = vmatpush.msra.mxu0 %v271
    %298 = vmatpush.msra.mxu0 %v269
    %299 = vmatpush.msra.mxu0 %v267
    %300 = vmatpush.msra.mxu0 %v265
    %301 = vmatpush.msra.mxu0 %v263
    %302 = vmatpush.msra.mxu0 %v261
    %303 = vmatpush.msra.mxu0 %v259
    %304 = vmatpush.msra.mxu0 %v257
    %305 = vmatpush.msra.mxu0 %v255
    %306 = vmatpush.msra.mxu0 %v253
    %307 = vmatmul.f32.gmra.mxu0 %v252
    %v308 = vpop.f32.mrf.mxu0
    %v309 = vadd.f32 %v287, %v308
    %310 = vdwg.mxu0
    %311 = vmatpush.msra.mxu0 %v284
    %312 = vmatpush.msra.mxu0 %v282
    %313 = vmatpush.msra.mxu0 %v280
    %314 = vmatpush.msra.mxu0 %v278
    %315 = vmatpush.msra.mxu0 %v276
    %316 = vmatpush.msra.mxu0 %v274
    %317 = vmatpush.msra.mxu0 %v272
    %318 = vmatpush.msra.mxu0 %v270
    %319 = vmatpush.msra.mxu0 %v268
    %320 = vmatpush.msra.mxu0 %v266
    %321 = vmatpush.msra.mxu0 %v264
    %322 = vmatpush.msra.mxu0 %v262
    %323 = vmatpush.msra.mxu0 %v260
    %324 = vmatpush.msra.mxu0 %v258
    %325 = vmatpush.msra.mxu0 %v256
    %326 = vmatpush.msra.mxu0 %v254
    %327 = vmatmul.f32.gmra.mxu0 %v252
    %v328 = vpop.f32.mrf.mxu0
    %v329 = vadd.f32 %v288, %v328
    %330 = vdwg.mxu0
    %v331 = vld [vmem:[%s11] sm:$0x3]
    %v332 = vld [vmem:[%s12] sm:$0x3]
    %v333 = vadd.f32 %v309, %v329
    %334 = vadd.xlane.f32.xlu0 %v333
    %v335 = vpop.xlane.xlu0 %334
    %v336 = vrcp.pop 256.0
    %v337 = vmul.f32 256.0, %v336
    %v338 = vsub.f32 1.0, %v337
    %v339 = vmul.f32 %v336, %v338
    %v340 = vadd.f32 %v336, %v339
    %vm341 = vweird.f32 %v336
    %v342 = vsel %vm341, %v336, %v340
    %v343 = vmul.f32 %v335, %v342
    %v344 = vmul.f32 %v309, %v309
    %v345 = vmul.f32 %v329, %v329
    %v346 = vadd.f32 %v344, %v345
    %347 = vadd.xlane.f32.xlu0 %v346
    %v348 = vpop.xlane.xlu0 %347
    %v349 = vmul.f32 %v348, %v342
    %v350 = vmul.f32 %v343, %v343
    %v351 = vsub.f32 %v349, %v350
    %v352 = vmax.f32 %v351, 0.0
    %v353 = vadd.f32 %v352, 1e-05
    %v354 = vrsqrt.pop %v353
    %v355 = vmul.f32 %v354, %v353
    %v356 = vmul.f32 %v355, %v354
    %v357 = vmul.f32 0.5, %v356
    %v358 = vsub.f32 1.5, %v357
    %v359 = vmul.f32 %v354, %v358
    %vm360 = vweird.f32 %v353
    %vm361 = vweird.f32 %v354
    %vm362 = vmor %vm360, %vm361
    %v363 = vsel %vm362, %v354, %v359
    %v365 = vperm.slane %v331, 0
    %v366 = vperm.slane %v331, 1
    %v369 = vmul.f32 %v365, %v363
    %v370 = vmul.f32 %v366, %v363
    %v371 = vmul.f32 %v309, %v369
    %v372 = vmul.f32 %v329, %v370
    %v373 = vmul.f32 %v343, %v369
    %v374 = vmul.f32 %v343, %v370
    %v376 = vperm.slane %v332, 0
    %v377 = vperm.slane %v332, 1
    %v380 = vsub.f32 %v376, %v373
    %v381 = vsub.f32 %v377, %v374
    %v382 = vadd.f32 %v371, %v380
    %v383 = vadd.f32 %v372, %v381
    %v384 = vmax.f32 %v382, 0.0
    %v385 = vmax.f32 %v383, 0.0
    %386 = vst [vmem:[#allocation7] sm:$0xff] %v384
    %387 = vst [vmem:[#allocation7 + $0x8] sm:$0xff] %v385
    // Predicated region
    $region62: #{tpu_custom_call.1} parent=1 // pred_check
      _
    $region63: #{tpu_custom_call.1} parent=1 // pred_check_branch
      %389 = sbr.rel (0) target = $region65
    $region64: #{tpu_custom_call.1} parent=1 // pred_region
      %391 = vsyncadd [#allocation4], 0
      %s393 = sshll.u32 [#allocation7], 4
      %s394 = int_to_ptr.vmem [resolvable:$true] %s393
      %s395 = sshll.u32 %s13, 4
      %s396 = int_to_ptr.hbm [resolvable:$true] %s395
      %398 = dma.vmem_to_hbm [thread:$0]  %s394, 256, %s396, [#allocation4]
    $region65: #{tpu_custom_call.1} parent=1 // pred_fallthru
      _
    // Predicated region
    $region66: #{tpu_custom_call.1} parent=1 // pred_check
      _
    $region67: #{tpu_custom_call.1} parent=1 // pred_check_branch
      %400 = sbr.rel (0) target = $region69
    $region68: #{tpu_custom_call.1} parent=1 // pred_region
      %402 = dma.done [#allocation4], 256
    $region69: #{tpu_custom_call.1} parent=1 // pred_fallthru
      _
    %403 = vsyncpa [#allocation3], 1
    %404 = vsyncpa [#allocation6], 1
    %405 = vsyncpa [#allocation4], 1

</llo_original>
